<compile_context>
chip_gen: v6e
topology: v6e:2x2x1
jax: 0.10.0
libtpu: 0.0.40
codegen_flags: <defaults>
</compile_context>

<pallas_src>
import jax
import jax.numpy as jnp
from jax.experimental import pallas as pl
from jax.experimental.pallas import tpu as pltpu


def _round_up(x, m):
    return (x + m - 1) // m * m


def _fbp_kernel(consts_ref, text_ref, img_ref, beh_ref,
                vt_ref, vi_ref, vb_ref, out_ref):
    f32 = jnp.float32

    # Activations may be stored in bf16 (bandwidth optimization); all math in f32.
    t = text_ref[...].astype(f32)          # (TB, Dt)
    im = img_ref[...].astype(f32)          # (TB, Di)
    bh = beh_ref[...].astype(f32)          # (TB, H)

    # Folded scalar biases live in SMEM: [sum(bt), sum(bi), bb@Wbil, bbil].
    bt_s = consts_ref[0]
    bi_s = consts_ref[1]
    bb_s = consts_ref[2]
    bbil_s = consts_ref[3]

    # Three per-row reductions (VPU multiply + XLU lane reduce, f32 accumulation).
    text_sum = jnp.sum(t * vt_ref[...], axis=-1, keepdims=True) + bt_s    # (TB, 1)
    img_sum = jnp.sum(im * vi_ref[...], axis=-1, keepdims=True) + bi_s    # (TB, 1)
    beh_dot = jnp.sum(bh * vb_ref[...], axis=-1, keepdims=True) + bb_s    # (TB, 1)

    logits = text_sum * img_sum * beh_dot + bbil_s
    out_ref[...] = jax.nn.sigmoid(logits).astype(out_ref.dtype)


def factorized_bilinear_pooling(text, img, beh, params, *,
                                block_batch=1024,
                                act_dtype=None):
    """Fused FactorizedBilinearPooling forward.

    Args:
      text: [B, text_dim] activations.
      img:  [B, img_dim] activations.
      beh:  [B, hidden] activations.
      params: (wt, bt, wi, bi, wb, bb, wbil, bbil) with weights laid out
        [in_dim, out_dim] (PyTorch nn.Linear weights pre-transposed) and biases
        broadcastable rows / (H,1) / (1,1).
      block_batch: target batch-tile size (rows) for the pipelined grid.
      act_dtype: optional storage dtype for the streamed activations
        (e.g. jnp.bfloat16 halves HBM traffic; math stays f32 in-kernel).
    """
    wt, bt, wi, bi, wb, bb, wbil, bbil = params
    B, Dt = text.shape
    _, Di = img.shape
    _, Dh = beh.shape
    H = wt.shape[1]
    f32 = jnp.float32

    # ---- Fold the weights once (exact algebra, tiny cost, done outside the kernel).
    vt = jnp.sum(wt.astype(f32), axis=1).reshape(1, Dt)          # Wt @ 1
    vi = jnp.sum(wi.astype(f32), axis=1).reshape(1, Di)          # Wi @ 1
    wbil_col = wbil.astype(f32).reshape(H, 1)
    vb = jnp.matmul(wb.astype(f32), wbil_col).reshape(1, Dh)     # Wb @ Wbil
    consts = jnp.stack([
        jnp.sum(bt.astype(f32)),                                     # sum(bt)
        jnp.sum(bi.astype(f32)),                                     # sum(bi)
        jnp.matmul(bb.astype(f32).reshape(1, H), wbil_col).reshape(()),  # bb @ Wbil
        bbil.astype(f32).reshape(()),                                # bbil
    ]).astype(f32)                                                   # (4,) -> SMEM

    # ---- Optional narrow storage for the streamed (bandwidth-dominant) activations.
    if act_dtype is not None:
        text = text.astype(act_dtype)
        img = img.astype(act_dtype)
        beh = beh.astype(act_dtype)

    # ---- Batch-tile selection: multiple of 16 rows (covers f32/bf16 sublane packing),
    #      capped by a VMEM budget that leaves headroom even for v7x's 64 MiB part.
    #      The grid is ragged (pl.cdiv) so no padding copy of the activations is made.
    SUB = 16
    itemsize = jnp.dtype(text.dtype).itemsize
    # double-buffered activation tiles + (small) double-buffered f32 output tile
    bytes_per_row = 2 * (Dt + Di + Dh) * itemsize + 2 * 4
    act_budget = 24 * 1024 * 1024
    tb_cap = max(SUB, (act_budget // bytes_per_row) // SUB * SUB)
    tb = min(_round_up(block_batch, SUB), tb_cap)
    if tb >= B:
        # Single block that exactly covers the arrays (always layout-legal).
        tb = B
    else:
        # Re-balance so the last (ragged) block wastes as little DMA as possible.
        nblocks = pl.cdiv(B, tb)
        tb = _round_up(pl.cdiv(B, nblocks), SUB)
    grid = (pl.cdiv(B, tb),)

    out = pl.pallas_call(
        _fbp_kernel,
        out_shape=jax.ShapeDtypeStruct((B, 1), jnp.float32),
        grid=grid,
        in_specs=[
            # folded scalar biases: tiny f32[4] array resident in SMEM
            pl.BlockSpec(memory_space=pltpu.MemorySpace.SMEM),
            # streamed activation tiles (auto double-buffered per grid step)
            pl.BlockSpec((tb, Dt), lambda b: (b, 0)),
            pl.BlockSpec((tb, Di), lambda b: (b, 0)),
            pl.BlockSpec((tb, Dh), lambda b: (b, 0)),
            # folded weight vectors: constant block index => stay resident, no re-DMA
            pl.BlockSpec((1, Dt), lambda b: (0, 0)),
            pl.BlockSpec((1, Di), lambda b: (0, 0)),
            pl.BlockSpec((1, Dh), lambda b: (0, 0)),
        ],
        out_specs=pl.BlockSpec((tb, 1), lambda b: (b, 0)),
        compiler_params=pltpu.CompilerParams(
            dimension_semantics=("parallel",),      # megacore sharding on v7x
            vmem_limit_bytes=32 * 1024 * 1024,      # explicit, safe on v5e/v6e/v7x
        ),
    )(consts, text, img, beh, vt, vi, vb)

    return out


def _reference(text, img, beh, params):
    """Pure-JAX mirror of the PyTorch code (materializes the [B,H,H] outer product)."""
    wt, bt, wi, bi, wb, bb, wbil, bbil = params
    text_out = text @ wt + bt
    img_out = img @ wi + bi
    beh_out = beh @ wb + bb
    bil1 = jnp.matmul(text_out[:, :, None], img_out[:, None, :]).sum(axis=2)
    bil2 = jnp.matmul(beh_out[:, :, None], bil1[:, None, :]).sum(axis=2)
    return jax.nn.sigmoid(bil2 @ wbil + bbil)


if __name__ == "__main__":
    # Small, lane-friendly stand-ins for (text=768, img=2048, hidden=256).
    B = 4
    TEXT_DIM = 128
    IMG_DIM = 256
    HIDDEN = 128

    key = jax.random.PRNGKey(0)
    ks = jax.random.split(key, 11)
    s = 0.02  # keeps logits O(1) so sigmoid is not saturated in the check

    wt = jax.random.normal(ks[0], (TEXT_DIM, HIDDEN), jnp.float32) * s
    bt = jax.random.normal(ks[1], (1, HIDDEN), jnp.float32) * s
    wi = jax.random.normal(ks[2], (IMG_DIM, HIDDEN), jnp.float32) * s
    bi = jax.random.normal(ks[3], (1, HIDDEN), jnp.float32) * s
    wb = jax.random.normal(ks[4], (HIDDEN, HIDDEN), jnp.float32) * s
    bb = jax.random.normal(ks[5], (1, HIDDEN), jnp.float32) * s
    wbil = jax.random.normal(ks[6], (HIDDEN, 1), jnp.float32) * s
    bbil = jax.random.normal(ks[7], (1, 1), jnp.float32) * s
    params = (wt, bt, wi, bi, wb, bb, wbil, bbil)

    text = jax.random.normal(ks[8], (B, TEXT_DIM), jnp.float32)
    img = jax.random.normal(ks[9], (B, IMG_DIM), jnp.float32)
    beh = jax.random.normal(ks[10], (B, HIDDEN), jnp.float32)

    ref = jax.block_until_ready(_reference(text, img, beh, params))

    # f32 path: exact math modulo FP reordering.
    out = jax.block_until_ready(factorized_bilinear_pooling(text, img, beh, params))
    assert out.shape == (B, 1), out.shape
    assert jnp.allclose(out, ref, atol=5e-5, rtol=5e-5), (out, ref)

    # bf16 activation-storage path: halves HBM traffic for this bandwidth-bound head.
    out_bf16 = jax.block_until_ready(
        factorized_bilinear_pooling(text, img, beh, params, act_dtype=jnp.bfloat16))
    assert out_bf16.shape == (B, 1), out_bf16.shape
    assert jnp.allclose(out_bf16, ref, atol=2e-2), (out_bf16, ref)

    print("KERNEL_OK")
</pallas_src>

<mosaic_0001>
module attributes {stable_mosaic.version = 11 : i64} {
  func.func @_fbp_kernel(%arg0: i32, %arg1: memref<4xf32, #tpu.memory_space<smem>>, %arg2: memref<4x128xf32, #tpu.memory_space<vmem>>, %arg3: memref<4x256xf32, #tpu.memory_space<vmem>>, %arg4: memref<4x128xf32, #tpu.memory_space<vmem>>, %arg5: memref<1x128xf32, #tpu.memory_space<vmem>>, %arg6: memref<1x256xf32, #tpu.memory_space<vmem>>, %arg7: memref<1x128xf32, #tpu.memory_space<vmem>>, %arg8: memref<4x1xf32, #tpu.memory_space<vmem>>) attributes {dimension_semantics = [#tpu.dimension_semantics<parallel>], iteration_bounds = array<i64: 1>, scalar_prefetch = 0 : i64, scratch_operands = 0 : i64, tpu.core_type = #tpu.core_type<tc>, window_params = [{transform_indices = @transform_0, window_bounds = array<i64: 4>}, {transform_indices = @transform_1, window_bounds = array<i64: 4, 128>}, {transform_indices = @transform_2, window_bounds = array<i64: 4, 256>}, {transform_indices = @transform_3, window_bounds = array<i64: 4, 128>}, {pipeline_mode = #tpu.pipeline_mode<synchronous>, transform_indices = @transform_4, window_bounds = array<i64: 1, 128>}, {pipeline_mode = #tpu.pipeline_mode<synchronous>, transform_indices = @transform_5, window_bounds = array<i64: 1, 256>}, {pipeline_mode = #tpu.pipeline_mode<synchronous>, transform_indices = @transform_6, window_bounds = array<i64: 1, 128>}, {transform_indices = @transform_7, window_bounds = array<i64: 4, 1>}]} {
    %c0 = arith.constant 0 : index
    %c0_0 = arith.constant 0 : index
    %0 = vector.load %arg2[%c0, %c0_0] : memref<4x128xf32, #tpu.memory_space<vmem>>, vector<4x128xf32>
    %c0_1 = arith.constant 0 : index
    %c0_2 = arith.constant 0 : index
    %1 = vector.load %arg3[%c0_1, %c0_2] : memref<4x256xf32, #tpu.memory_space<vmem>>, vector<4x256xf32>
    %c0_3 = arith.constant 0 : index
    %c0_4 = arith.constant 0 : index
    %2 = vector.load %arg4[%c0_3, %c0_4] : memref<4x128xf32, #tpu.memory_space<vmem>>, vector<4x128xf32>
    %c0_5 = arith.constant 0 : index
    %3 = memref.load %arg1[%c0_5] : memref<4xf32, #tpu.memory_space<smem>>
    %c1 = arith.constant 1 : index
    %4 = memref.load %arg1[%c1] : memref<4xf32, #tpu.memory_space<smem>>
    %c2 = arith.constant 2 : index
    %5 = memref.load %arg1[%c2] : memref<4xf32, #tpu.memory_space<smem>>
    %c3 = arith.constant 3 : index
    %6 = memref.load %arg1[%c3] : memref<4xf32, #tpu.memory_space<smem>>
    %c0_6 = arith.constant 0 : index
    %c0_7 = arith.constant 0 : index
    %7 = vector.load %arg5[%c0_6, %c0_7] : memref<1x128xf32, #tpu.memory_space<vmem>>, vector<1x128xf32>
    %8 = vector.broadcast %7 : vector<1x128xf32> to vector<4x128xf32>
    %9 = arith.mulf %0, %8 : vector<4x128xf32>
    %cst = arith.constant dense<0.000000e+00> : vector<4xf32>
    %10 = vector.multi_reduction <add>, %9, %cst [1] : vector<4x128xf32> to vector<4xf32>
    %11 = vector.shape_cast %10 : vector<4xf32> to vector<4x1xf32>
    %12 = vector.broadcast %3 : f32 to vector<4x1xf32>
    %13 = arith.addf %11, %12 : vector<4x1xf32>
    %c0_8 = arith.constant 0 : index
    %c0_9 = arith.constant 0 : index
    %14 = vector.load %arg6[%c0_8, %c0_9] : memref<1x256xf32, #tpu.memory_space<vmem>>, vector<1x256xf32>
    %15 = vector.broadcast %14 : vector<1x256xf32> to vector<4x256xf32>
    %16 = arith.mulf %1, %15 : vector<4x256xf32>
    %cst_10 = arith.constant dense<0.000000e+00> : vector<4xf32>
    %17 = vector.multi_reduction <add>, %16, %cst_10 [1] : vector<4x256xf32> to vector<4xf32>
    %18 = vector.shape_cast %17 : vector<4xf32> to vector<4x1xf32>
    %19 = vector.broadcast %4 : f32 to vector<4x1xf32>
    %20 = arith.addf %18, %19 : vector<4x1xf32>
    %c0_11 = arith.constant 0 : index
    %c0_12 = arith.constant 0 : index
    %21 = vector.load %arg7[%c0_11, %c0_12] : memref<1x128xf32, #tpu.memory_space<vmem>>, vector<1x128xf32>
    %22 = vector.broadcast %21 : vector<1x128xf32> to vector<4x128xf32>
    %23 = arith.mulf %2, %22 : vector<4x128xf32>
    %cst_13 = arith.constant dense<0.000000e+00> : vector<4xf32>
    %24 = vector.multi_reduction <add>, %23, %cst_13 [1] : vector<4x128xf32> to vector<4xf32>
    %25 = vector.shape_cast %24 : vector<4xf32> to vector<4x1xf32>
    %26 = vector.broadcast %5 : f32 to vector<4x1xf32>
    %27 = arith.addf %25, %26 : vector<4x1xf32>
    %28 = arith.mulf %13, %20 : vector<4x1xf32>
    %29 = arith.mulf %28, %27 : vector<4x1xf32>
    %30 = vector.broadcast %6 : f32 to vector<4x1xf32>
    %31 = arith.addf %29, %30 : vector<4x1xf32>
    %32 = arith.negf %31 : vector<4x1xf32>
    %33 = math.exp %32 : vector<4x1xf32>
    %cst_14 = arith.constant 1.000000e+00 : f32
    %34 = vector.broadcast %cst_14 : f32 to vector<4x1xf32>
    %35 = arith.addf %34, %33 : vector<4x1xf32>
    %36 = arith.divf %34, %35 : vector<4x1xf32>
    %c0_15 = arith.constant 0 : index
    %c0_16 = arith.constant 0 : index
    %37 = vector.load %arg8[%c0_15, %c0_16] : memref<4x1xf32, #tpu.memory_space<vmem>>, vector<4x1xf32>
    tpu.vector_store %arg8[%c0_15, %c0_16], %36 {strides = array<i32>} : memref<4x1xf32, #tpu.memory_space<vmem>>, vector<4x1xf32>,
    return
  }
  func.func @transform_0(%arg0: i32) -> i32 {
    %c0_i32 = arith.constant 0 : i32
    %c0_i32_0 = arith.constant 0 : i32
    return %c0_i32 : i32
  }
  func.func @transform_1(%arg0: i32) -> (i32, i32) {
    %c0_i32 = arith.constant 0 : i32
    %c0_i32_0 = arith.constant 0 : i32
    return %arg0, %c0_i32 : i32, i32
  }
  func.func @transform_2(%arg0: i32) -> (i32, i32) {
    %c0_i32 = arith.constant 0 : i32
    %c0_i32_0 = arith.constant 0 : i32
    return %arg0, %c0_i32 : i32, i32
  }
  func.func @transform_3(%arg0: i32) -> (i32, i32) {
    %c0_i32 = arith.constant 0 : i32
    %c0_i32_0 = arith.constant 0 : i32
    return %arg0, %c0_i32 : i32, i32
  }
  func.func @transform_4(%arg0: i32) -> (i32, i32) {
    %c0_i32 = arith.constant 0 : i32
    %c0_i32_0 = arith.constant 0 : i32
    %c0_i32_1 = arith.constant 0 : i32
    return %c0_i32, %c0_i32_0 : i32, i32
  }
  func.func @transform_5(%arg0: i32) -> (i32, i32) {
    %c0_i32 = arith.constant 0 : i32
    %c0_i32_0 = arith.constant 0 : i32
    %c0_i32_1 = arith.constant 0 : i32
    return %c0_i32, %c0_i32_0 : i32, i32
  }
  func.func @transform_6(%arg0: i32) -> (i32, i32) {
    %c0_i32 = arith.constant 0 : i32
    %c0_i32_0 = arith.constant 0 : i32
    %c0_i32_1 = arith.constant 0 : i32
    return %c0_i32, %c0_i32_0 : i32, i32
  }
  func.func @transform_7(%arg0: i32) -> (i32, i32) {
    %c0_i32 = arith.constant 0 : i32
    %c0_i32_0 = arith.constant 0 : i32
    return %arg0, %c0_i32 : i32, i32
  }
}

</mosaic_0001>

<llo_original>
// kernel: tpu_custom_call.1
$region0: #{tpu_custom_call.1}
  #allocation0 [shape = 'u32[]', space=smem, size = 0x4, offset = 0x4, fixed_abs, tag = 'smem constant byte address 0x4 - core index']
  #allocation1 [shape = 'u32[144,128]{1,0:T(1,128)}', space=vmem, size = 0x12000, scoped, tag = 'internal scratch']
  %s0 = inlined_call_operand.hbm [shape: f32[4], index: 0, kind: input, shape index: {}]
  %s1 = inlined_call_operand.hbm [shape: f32[4,128], index: 1, kind: input, shape index: {}]
  %s2 = inlined_call_operand.hbm [shape: f32[4,256], index: 2, kind: input, shape index: {}]
  %s3 = inlined_call_operand.vmem [shape: f32[4,128], index: 3, kind: input, shape index: {}]
  %s4 = inlined_call_operand.vmem [shape: f32[1,128], index: 4, kind: input, shape index: {}]
  %s5 = inlined_call_operand.vmem [shape: f32[1,256], index: 5, kind: input, shape index: {}]
  %s6 = inlined_call_operand.vmem [shape: f32[1,128], index: 6, kind: input, shape index: {}]
  %s7 = inlined_call_operand.vmem [shape: f32[4,1], index: 7, kind: output, shape index: {}]
  %s8 = sld [smem:[#allocation0]]
  $region50: #{tpu_custom_call.1} parent=0
    _
  %s10 = ssub.s32 1, %s8
  %s11 = scalar_select 0, %s10, %s8
  $region1: #{tpu_custom_call.1} parent=0
    #allocation2 [shape = 'u8[512]{0}', space=smem, size = 0x200, scoped, tag = 'input window, operand 0, single buffered']
    #allocation3 [shape = 's32[1]{0}', space=sflag, size = 0x4, scoped, tag = 'scoped memory for tpu_custom_call.1']
    #allocation4 [shape = 's32[1]{0}', space=sflag, size = 0x4, scoped, tag = 'scoped memory for tpu_custom_call.1']
    #allocation5 [shape = 'u8[2048]{0}', space=vmem, size = 0x800, scoped, tag = 'input window, operand 1, single buffered']
    #allocation6 [shape = 'u8[4096]{0}', space=vmem, size = 0x1000, scoped, tag = 'input window, operand 2, single buffered']
    #allocation7 [shape = 's32[1]{0}', space=sflag, size = 0x4, scoped, tag = 'scoped memory for tpu_custom_call.1']
    %12 = vsyncpa [#allocation4], 0
    %13 = vsyncpa [#allocation3], 0
    %14 = vsyncpa [#allocation7], 0
    // Predicated region
    $region2: #{tpu_custom_call.1} parent=1 // pred_check
      _
    $region3: #{tpu_custom_call.1} parent=1 // pred_check_branch
      %16 = sbr.rel (0) target = $region5
    $region4: #{tpu_custom_call.1} parent=1 // pred_region
      %s18 = ssub.s32 16, 16
      %19 = vsyncadd [#allocation4], %s18
      %22 = dma.hbm_to_smem %s0, 16, [#allocation2], [#allocation4]
    $region5: #{tpu_custom_call.1} parent=1 // pred_fallthru
      _
    // Predicated region
    $region6: #{tpu_custom_call.1} parent=1 // pred_check
      _
    $region7: #{tpu_custom_call.1} parent=1 // pred_check_branch
      %24 = sbr.rel (0) target = $region9
    $region8: #{tpu_custom_call.1} parent=1 // pred_region
      %s26 = ssub.s32 64, 64
      %27 = vsyncadd [#allocation3], %s26
      %s29 = sshll.u32 [#allocation5], 4
      %s30 = int_to_ptr.vmem [resolvable:$true] %s29
      %32 = dma.hbm_to_vmem [thread:$0]  %s1, 64, %s30, [#allocation3]
    $region9: #{tpu_custom_call.1} parent=1 // pred_fallthru
      _
    // Predicated region
    $region10: #{tpu_custom_call.1} parent=1 // pred_check
      _
    $region11: #{tpu_custom_call.1} parent=1 // pred_check_branch
      %34 = sbr.rel (0) target = $region13
    $region12: #{tpu_custom_call.1} parent=1 // pred_region
      %s36 = ssub.s32 128, 128
      %37 = vsyncadd [#allocation7], %s36
      %s39 = sshll.u32 [#allocation6], 4
      %s40 = int_to_ptr.vmem [resolvable:$true] %s39
      %42 = dma.hbm_to_vmem [thread:$0]  %s2, 128, %s40, [#allocation7]
    $region13: #{tpu_custom_call.1} parent=1 // pred_fallthru
      _
    // Predicated region
    $region14: #{tpu_custom_call.1} parent=1 // pred_check
      _
    $region15: #{tpu_custom_call.1} parent=1 // pred_check_branch
      %44 = sbr.rel (0) target = $region17
    $region16: #{tpu_custom_call.1} parent=1 // pred_region
      _
    $region17: #{tpu_custom_call.1} parent=1 // pred_fallthru
      _
    // Predicated region
    $region18: #{tpu_custom_call.1} parent=1 // pred_check
      _
    $region19: #{tpu_custom_call.1} parent=1 // pred_check_branch
      %46 = sbr.rel (0) target = $region21
    $region20: #{tpu_custom_call.1} parent=1 // pred_region
      _
    $region21: #{tpu_custom_call.1} parent=1 // pred_fallthru
      _
    // Predicated region
    $region22: #{tpu_custom_call.1} parent=1 // pred_check
      _
    $region23: #{tpu_custom_call.1} parent=1 // pred_check_branch
      %48 = sbr.rel (0) target = $region25
    $region24: #{tpu_custom_call.1} parent=1 // pred_region
      _
    $region25: #{tpu_custom_call.1} parent=1 // pred_fallthru
      _
    // Predicated region
    $region26: #{tpu_custom_call.1} parent=1 // pred_check
      _
    $region27: #{tpu_custom_call.1} parent=1 // pred_check_branch
      %50 = sbr.rel (0) target = $region29
    $region28: #{tpu_custom_call.1} parent=1 // pred_region
      _
    $region29: #{tpu_custom_call.1} parent=1 // pred_fallthru
      _
    // Predicated region
    $region30: #{tpu_custom_call.1} parent=1 // pred_check
      _
    $region31: #{tpu_custom_call.1} parent=1 // pred_check_branch
      %52 = sbr.rel (0) target = $region33
    $region32: #{tpu_custom_call.1} parent=1 // pred_region
      %53 = dma.done [#allocation4], 16
    $region33: #{tpu_custom_call.1} parent=1 // pred_fallthru
      _
    // Predicated region
    $region34: #{tpu_custom_call.1} parent=1 // pred_check
      _
    $region35: #{tpu_custom_call.1} parent=1 // pred_check_branch
      %55 = sbr.rel (0) target = $region37
    $region36: #{tpu_custom_call.1} parent=1 // pred_region
      %56 = dma.done [#allocation3], 64
    $region37: #{tpu_custom_call.1} parent=1 // pred_fallthru
      _
    // Predicated region
    $region38: #{tpu_custom_call.1} parent=1 // pred_check
      _
    $region39: #{tpu_custom_call.1} parent=1 // pred_check_branch
      %58 = sbr.rel (0) target = $region41
    $region40: #{tpu_custom_call.1} parent=1 // pred_region
      %59 = dma.done [#allocation7], 128
    $region41: #{tpu_custom_call.1} parent=1 // pred_fallthru
      _
    %60 = sfence
    %v61 = vld [vmem:[#allocation5] sm:$0xf]
    %v62 = vld [vmem:[#allocation6] sm:$0xff]
    %v63 = vld [vmem:[%s3] sm:$0xf]
    %s64 = sld [smem:[#allocation2]]
    %s65 = sld [smem:[#allocation2 + $0x1]]
    %s66 = sld [smem:[#allocation2 + $0x2]]
    %s67 = sld [smem:[#allocation2 + $0x3]]
    %v68 = vld [vmem:[%s4] sm:$0x1]
    %v70 = vlaneseq
    %v71 = vshrl.u32 %v70, 7
    %v72 = vsub.s32 0, %v71
    %v73 = vrot.slane %v68, %v72
    %v75 = vmul.f32 %v61, %v73
    %vm76 = vcmask 1043456
    %v77 = vsel %vm76, %v75, 0.0
    %78 = vadd.xlane.f32.xlu0 %v77
    %v79 = vpop.xlane.xlu0 %78
    %v80 = vstv %s64
    %v81 = vadd.f32 %v79, %v80
    %v82 = vld [vmem:[%s5] sm:$0x3]
    %v84 = vlaneseq
    %v85 = vshrl.u32 %v84, 7
    %v86 = vsub.s32 0, %v85
    %v87 = vrot.slane %v82, %v86
    %v88 = vlaneseq
    %v89 = vshrl.u32 %v88, 7
    %v90 = vsub.s32 1, %v89
    %v91 = vrot.slane %v82, %v90
    %v92 = vcombine.low %v87, %v91
    %v94 = vmul.f32 %v62, %v92
    %v96 = vcombine.high %v94, %v94
    %v98 = vsel %vm76, %v94, 0.0
    %v99 = vsel %vm76, %v96, 0.0
    %v100 = vadd.f32 %v98, %v99
    %101 = vadd.xlane.f32.xlu0 %v100
    %v102 = vpop.xlane.xlu0 %101
    %v103 = vstv %s65
    %v104 = vadd.f32 %v102, %v103
    %v105 = vld [vmem:[%s6] sm:$0x1]
    %v107 = vlaneseq
    %v108 = vshrl.u32 %v107, 7
    %v109 = vsub.s32 0, %v108
    %v110 = vrot.slane %v105, %v109
    %v112 = vmul.f32 %v63, %v110
    %v113 = vsel %vm76, %v112, 0.0
    %114 = vadd.xlane.f32.xlu0 %v113
    %v115 = vpop.xlane.xlu0 %114
    %v116 = vstv %s66
    %v117 = vadd.f32 %v115, %v116
    %v118 = vmul.f32 %v81, %v104
    %v119 = vmul.f32 %v118, %v117
    %v120 = vstv %s67
    %v121 = vadd.f32 %v119, %v120
    %v122 = vxor.u32 %v121, 2147483648
    %v123 = vmul.f32 %v122, 1.442695
    %v124 = vpow.pop %v123
    %v125 = vadd.f32 %v124, 1.0
    %v126 = vrcp.pop %v125
    %v127 = vmul.f32 1.0, %v126
    %vm128 = vcmask 3072
    %129 = vst.msk [vmem:[%s7] sm:$0xf] %vm128, %v127
    // Predicated region
    $region42: #{tpu_custom_call.1} parent=1 // pred_check
      _
    $region43: #{tpu_custom_call.1} parent=1 // pred_check_branch
      %131 = sbr.rel (0) target = $region45
    $region44: #{tpu_custom_call.1} parent=1 // pred_region
      _
    $region45: #{tpu_custom_call.1} parent=1 // pred_fallthru
      _
    // Predicated region
    $region46: #{tpu_custom_call.1} parent=1 // pred_check
      _
    $region47: #{tpu_custom_call.1} parent=1 // pred_check_branch
      %133 = sbr.rel (0) target = $region49
    $region48: #{tpu_custom_call.1} parent=1 // pred_region
      _
    $region49: #{tpu_custom_call.1} parent=1 // pred_fallthru
      _
    %134 = vsyncpa [#allocation3], 1
    %135 = vsyncpa [#allocation7], 1
    %136 = vsyncpa [#allocation4], 1

</llo_original>
